<compile_context>
chip_gen: v7x
topology: tpu7x:2x2x1
jax: 0.10.0
libtpu: 0.0.40
codegen_flags: <defaults>
</compile_context>

<pallas_src>
import functools

import jax
import jax.numpy as jnp
from jax.experimental import pallas as pl
from jax.experimental.pallas import tpu as pltpu


# ---------------------------------------------------------------------------
# Kernels
# ---------------------------------------------------------------------------

def film_kernel_split(e_ref, x_ref, w1_ref, b1_ref, w2g_ref, b2g_ref,
                      w2b_ref, b2b_ref, o_ref):
    """Two lane-aligned output dots; used when d_model % 128 != 0."""
    a = e_ref[...].astype(w1_ref.dtype)
    h = jnp.dot(a, w1_ref[...], preferred_element_type=jnp.float32)
    h = jnp.maximum(h + b1_ref[...], 0.0).astype(w2g_ref.dtype)
    gamma = jnp.dot(h, w2g_ref[...], preferred_element_type=jnp.float32) + b2g_ref[...]
    beta = jnp.dot(h, w2b_ref[...], preferred_element_type=jnp.float32) + b2b_ref[...]
    o_ref[...] = (gamma * x_ref[...].astype(jnp.float32) + beta).astype(o_ref.dtype)


def film_kernel_fused(e_ref, x_ref, w1_ref, b1_ref, w2_ref, b2_ref, o_ref):
    """Single (tm, 2*d_model) dot; used when d_model % 128 == 0 so the
    gamma/beta lane slice is vreg-tile aligned (no cross-tile slice cost)."""
    a = e_ref[...].astype(w1_ref.dtype)
    h = jnp.dot(a, w1_ref[...], preferred_element_type=jnp.float32)
    h = jnp.maximum(h + b1_ref[...], 0.0).astype(w2_ref.dtype)
    gb = jnp.dot(h, w2_ref[...], preferred_element_type=jnp.float32) + b2_ref[...]
    d = o_ref.shape[-1]
    o_ref[...] = (gb[:, :d] * x_ref[...].astype(jnp.float32)
                  + gb[:, d:]).astype(o_ref.dtype)


# ---------------------------------------------------------------------------
# Sizing helpers
# ---------------------------------------------------------------------------

def _round_up(n, m):
    return ((n + m - 1) // m) * m


def _vmem_limit_bytes():
    """Scoped-VMEM limit: physical per-core VMEM minus a small fixed headroom
    for compiler-internal scratch.  Fallback is 64 MiB (v7x per-TC VMEM) so a
    failed hardware query can never request more than the smallest chip has."""
    try:
        cap = int(pltpu.get_tpu_info().vmem_capacity_bytes)
    except Exception:
        cap = 64 * 1024 * 1024
    return max(cap - 8 * 1024 * 1024, 32 * 1024 * 1024)


def _weight_pipeline_kwargs():
    """Single-buffer constant-index weight/bias blocks when supported.
    Pallas double-buffers every input by default even though these block
    indices never change; single-buffering halves their VMEM residency."""
    try:
        pl.BlockSpec((8, 128), lambda i: (0, 0), pipeline_mode=pl.Buffered(1))
        return {"pipeline_mode": pl.Buffered(1)}, 1
    except Exception:
        return {}, 2


def _cap_tile(tm, d_model, d_hidden, e_item, x_item, out_item,
              w_item, weight_bufs, vmem_budget):
    """Shrink tm until double-buffered row streams + resident weights + in-kernel
    f32 intermediates fit the scoped-VMEM budget (single margin — already baked
    into the budget itself)."""
    weight_bytes = weight_bufs * (
        3 * d_model * d_hidden * w_item          # W1 + W2 (gamma|beta)
        + (d_hidden + 2 * d_model) * 4           # biases (kept f32)
    )
    tm_eff = max(_round_up(tm, 8), 8)
    while True:
        stream_bytes = 2 * tm_eff * d_model * (e_item + x_item + out_item)
        interm_bytes = 4 * tm_eff * (d_hidden + 2 * d_model)   # f32 h, gamma, beta
        if weight_bytes + stream_bytes + interm_bytes <= vmem_budget or tm_eff <= 8:
            break
        tm_eff = max(_round_up(tm_eff // 2, 8), 8)
    return tm_eff


# ---------------------------------------------------------------------------
# Public entry point
# ---------------------------------------------------------------------------

@functools.partial(jax.jit, static_argnames=("tm", "matmul_dtype"))
def film_forward(e_t, x, w1, b1, w2, b2, *, tm=512, matmul_dtype=jnp.bfloat16):
    """FiLM forward: gamma * x + beta with (gamma, beta) = MLP(e_t).

    e_t, x: (B, S, d_model); w1: (d_model, d_hidden); b1: (d_hidden,);
    w2: (d_hidden, 2*d_model); b2: (2*d_model,).
    tm is the primary tuning knob (sweep 256-1024 per generation); it is
    auto-clamped to the problem size, the 2-TensorCore split, and VMEM.
    Inference-mode semantics (dropout = identity).
    """
    B, S, d_model = e_t.shape
    d_hidden = w1.shape[1]
    M = B * S

    vmem_limit = _vmem_limit_bytes()
    weight_kwargs, weight_bufs = _weight_pipeline_kwargs()

    w_dtype = jnp.dtype(matmul_dtype) if matmul_dtype is not None else jnp.dtype(w1.dtype)
    e_item = jnp.dtype(e_t.dtype).itemsize
    x_item = jnp.dtype(x.dtype).itemsize
    out_item = jnp.dtype(x.dtype).itemsize
    w_item = w_dtype.itemsize

    # Row tile: clamp to problem size, force >= 2 grid steps when possible so
    # the "parallel" grid axis can split across v7x's two TensorCores, then cap
    # against the VMEM budget.
    tm_req = _round_up(min(int(tm), _round_up(M, 8)), 8)
    if M > 8:
        tm_req = min(tm_req, _round_up(pl.cdiv(M, 2), 8))
    tm_eff = _cap_tile(tm_req, d_model, d_hidden, e_item, x_item, out_item,
                       w_item, weight_bufs, vmem_limit)
    grid = pl.cdiv(M, tm_eff)

    # Metadata-only reshapes; no extra HBM pass (no padding, no output slice).
    e2 = e_t.reshape(M, d_model)
    x2 = x.reshape(M, d_model)

    # Weights cast once (tiny vs the row streams); biases stay f32-added.
    w1c = w1.astype(w_dtype)
    w2c = w2.astype(w_dtype)
    b1_2d = b1.reshape(1, d_hidden)

    if d_model % 128 == 0:
        kernel = film_kernel_fused
        inputs = (e2, x2, w1c, b1_2d, w2c, b2.reshape(1, 2 * d_model))
        weight_specs = [
            pl.BlockSpec((d_model, d_hidden), lambda i: (0, 0), **weight_kwargs),
            pl.BlockSpec((1, d_hidden), lambda i: (0, 0), **weight_kwargs),
            pl.BlockSpec((d_hidden, 2 * d_model), lambda i: (0, 0), **weight_kwargs),
            pl.BlockSpec((1, 2 * d_model), lambda i: (0, 0), **weight_kwargs),
        ]
    else:
        # Pre-split the output projection so gamma/beta are lane-aligned even
        # when d_model is not a multiple of 128.
        w2g, w2b = w2c[:, :d_model], w2c[:, d_model:]
        b2g = b2[:d_model].reshape(1, d_model)
        b2b = b2[d_model:].reshape(1, d_model)
        kernel = film_kernel_split
        inputs = (e2, x2, w1c, b1_2d, w2g, b2g, w2b, b2b)
        weight_specs = [
            pl.BlockSpec((d_model, d_hidden), lambda i: (0, 0), **weight_kwargs),
            pl.BlockSpec((1, d_hidden), lambda i: (0, 0), **weight_kwargs),
            pl.BlockSpec((d_hidden, d_model), lambda i: (0, 0), **weight_kwargs),
            pl.BlockSpec((1, d_model), lambda i: (0, 0), **weight_kwargs),
            pl.BlockSpec((d_hidden, d_model), lambda i: (0, 0), **weight_kwargs),
            pl.BlockSpec((1, d_model), lambda i: (0, 0), **weight_kwargs),
        ]

    flops = 6 * M * d_model * d_hidden + 4 * M * d_model
    bytes_accessed = (M * d_model * (e_item + x_item + out_item)
                      + (3 * d_model * d_hidden + d_hidden + 2 * d_model) * w_item)
    cost = pl.CostEstimate(flops=int(flops), transcendentals=0,
                           bytes_accessed=int(bytes_accessed))

    out = pl.pallas_call(
        kernel,
        out_shape=jax.ShapeDtypeStruct((M, d_model), x.dtype),
        grid_spec=pltpu.PrefetchScalarGridSpec(
            num_scalar_prefetch=0,
            grid=(grid,),
            in_specs=[
                pl.BlockSpec((tm_eff, d_model), lambda i: (i, 0)),   # e_t rows
                pl.BlockSpec((tm_eff, d_model), lambda i: (i, 0)),   # x rows
            ] + weight_specs,
            out_specs=pl.BlockSpec((tm_eff, d_model), lambda i: (i, 0)),
        ),
        compiler_params=pltpu.CompilerParams(
            # 1-D row grid; "parallel" lets the runtime shard it across both
            # TensorCores on v7x (no-op on single-TC v5e/v6e).
            dimension_semantics=("parallel",),
            vmem_limit_bytes=vmem_limit,
        ),
        cost_estimate=cost,
    )(*inputs)

    return out.reshape(B, S, d_model)


def film_reference(e_t, x, w1, b1, w2, b2):
    h = jnp.maximum(jnp.einsum("bsd,dh->bsh", e_t, w1) + b1, 0.0)
    gb = jnp.einsum("bsh,ho->bso", h, w2) + b2
    d_model = x.shape[-1]
    return gb[..., :d_model] * x + gb[..., d_model:]


if __name__ == "__main__":
    key = jax.random.PRNGKey(0)
    ks = jax.random.split(key, 10)

    # Small split-path shapes (d_model % 128 != 0): batch=2, seq=8, d_model=32.
    B, S, d_model, d_hidden = 2, 8, 32, 64
    e_t = jax.random.normal(ks[0], (B, S, d_model), dtype=jnp.float32)
    x = jax.random.normal(ks[1], (B, S, d_model), dtype=jnp.float32)
    w1 = jax.random.normal(ks[2], (d_model, d_hidden), dtype=jnp.float32) * 0.05
    b1 = jax.random.normal(ks[3], (d_hidden,), dtype=jnp.float32) * 0.05
    w2 = jax.random.normal(ks[4], (d_hidden, 2 * d_model), dtype=jnp.float32) * 0.05
    b2 = jax.random.normal(ks[5], (2 * d_model,), dtype=jnp.float32) * 0.05
    ref = film_reference(e_t, x, w1, b1, w2, b2)

    # Strict numeric check on the f32-operand path.
    out = jax.block_until_ready(
        film_forward(e_t, x, w1, b1, w2, b2, matmul_dtype=jnp.float32))
    assert out.shape == (B, S, d_model)
    assert jnp.allclose(out, ref, atol=1e-5, rtol=1e-5)

    # Default path (bf16 MXU operands, f32 accumulation): loose tolerance.
    out_bf = jax.block_until_ready(film_forward(e_t, x, w1, b1, w2, b2))
    assert jnp.allclose(out_bf, ref, atol=1e-1, rtol=5e-2)

    # Ragged M (B*S not a multiple of 8 / tile): exercises the masked edge block.
    e_r = jax.random.normal(ks[6], (1, 5, d_model), dtype=jnp.float32)
    x_r = jax.random.normal(ks[7], (1, 5, d_model), dtype=jnp.float32)
    out_r = jax.block_until_ready(
        film_forward(e_r, x_r, w1, b1, w2, b2, matmul_dtype=jnp.float32))
    assert out_r.shape == (1, 5, d_model)
    assert jnp.allclose(out_r, film_reference(e_r, x_r, w1, b1, w2, b2),
                        atol=1e-5, rtol=1e-5)

    # Fused single-dot path (d_model % 128 == 0) with the bf16 default.
    d_model2, d_hidden2 = 128, 64
    e_f = jax.random.normal(ks[8], (B, S, d_model2), dtype=jnp.float32)
    x_f = jax.random.normal(ks[9], (B, S, d_model2), dtype=jnp.float32)
    w1f = jax.random.normal(ks[2], (d_model2, d_hidden2), dtype=jnp.float32) * 0.05
    b1f = jax.random.normal(ks[3], (d_hidden2,), dtype=jnp.float32) * 0.05
    w2f = jax.random.normal(ks[4], (d_hidden2, 2 * d_model2), dtype=jnp.float32) * 0.05
    b2f = jax.random.normal(ks[5], (2 * d_model2,), dtype=jnp.float32) * 0.05
    out_f = jax.block_until_ready(film_forward(e_f, x_f, w1f, b1f, w2f, b2f))
    assert out_f.shape == (B, S, d_model2)
    assert jnp.allclose(out_f, film_reference(e_f, x_f, w1f, b1f, w2f, b2f),
                        atol=1e-1, rtol=5e-2)

    print("KERNEL_OK")
</pallas_src>

<mosaic_0001>
module attributes {stable_mosaic.version = 11 : i64} {
  func.func @film_kernel_split(%arg0: i32, %arg1: memref<8x32xf32, #tpu.memory_space<vmem>>, %arg2: memref<8x32xf32, #tpu.memory_space<vmem>>, %arg3: memref<32x64xf32, #tpu.memory_space<vmem>>, %arg4: memref<1x64xf32, #tpu.memory_space<vmem>>, %arg5: memref<64x32xf32, #tpu.memory_space<vmem>>, %arg6: memref<1x32xf32, #tpu.memory_space<vmem>>, %arg7: memref<64x32xf32, #tpu.memory_space<vmem>>, %arg8: memref<1x32xf32, #tpu.memory_space<vmem>>, %arg9: memref<8x32xf32, #tpu.memory_space<vmem>>) attributes {dimension_semantics = [#tpu.dimension_semantics<parallel>], iteration_bounds = array<i64: 2>, scalar_prefetch = 0 : i64, scratch_operands = 0 : i64, tpu.core_type = #tpu.core_type<tc>, window_params = [{transform_indices = @transform_0, window_bounds = array<i64: 8, 32>}, {transform_indices = @transform_1, window_bounds = array<i64: 8, 32>}, {pipeline_mode = #tpu.pipeline_mode<synchronous>, transform_indices = @transform_2, window_bounds = array<i64: 32, 64>}, {pipeline_mode = #tpu.pipeline_mode<synchronous>, transform_indices = @transform_3, window_bounds = array<i64: 1, 64>}, {pipeline_mode = #tpu.pipeline_mode<synchronous>, transform_indices = @transform_4, window_bounds = array<i64: 64, 32>}, {pipeline_mode = #tpu.pipeline_mode<synchronous>, transform_indices = @transform_5, window_bounds = array<i64: 1, 32>}, {pipeline_mode = #tpu.pipeline_mode<synchronous>, transform_indices = @transform_6, window_bounds = array<i64: 64, 32>}, {pipeline_mode = #tpu.pipeline_mode<synchronous>, transform_indices = @transform_7, window_bounds = array<i64: 1, 32>}, {transform_indices = @transform_8, window_bounds = array<i64: 8, 32>}]} {
    %c0 = arith.constant 0 : index
    %c0_0 = arith.constant 0 : index
    %0 = vector.load %arg1[%c0, %c0_0] : memref<8x32xf32, #tpu.memory_space<vmem>>, vector<8x32xf32>
    %c0_1 = arith.constant 0 : index
    %c0_2 = arith.constant 0 : index
    %1 = vector.load %arg3[%c0_1, %c0_2] : memref<32x64xf32, #tpu.memory_space<vmem>>, vector<32x64xf32>
    %cst = arith.constant dense<0.000000e+00> : vector<8x64xf32>
    %2 = tpu.matmul %0, %1, %cst {dimension_numbers = #tpu.dot_dimension_numbers<[1], [0], [0], [1], [0, 0, 1, 1], [], []>} : vector<8x32xf32>, vector<32x64xf32>, vector<8x64xf32> -> vector<8x64xf32>
    %c0_3 = arith.constant 0 : index
    %c0_4 = arith.constant 0 : index
    %3 = vector.load %arg4[%c0_3, %c0_4] : memref<1x64xf32, #tpu.memory_space<vmem>>, vector<1x64xf32>
    %4 = vector.broadcast %3 : vector<1x64xf32> to vector<8x64xf32>
    %5 = arith.addf %2, %4 : vector<8x64xf32>
    %cst_5 = arith.constant 0.000000e+00 : f32
    %6 = vector.broadcast %cst_5 : f32 to vector<8x64xf32>
    %7 = arith.maximumf %5, %6 : vector<8x64xf32>
    %c0_6 = arith.constant 0 : index
    %c0_7 = arith.constant 0 : index
    %8 = vector.load %arg5[%c0_6, %c0_7] : memref<64x32xf32, #tpu.memory_space<vmem>>, vector<64x32xf32>
    %cst_8 = arith.constant dense<0.000000e+00> : vector<8x32xf32>
    %9 = tpu.matmul %7, %8, %cst_8 {dimension_numbers = #tpu.dot_dimension_numbers<[1], [0], [0], [1], [0, 0, 1, 1], [], []>} : vector<8x64xf32>, vector<64x32xf32>, vector<8x32xf32> -> vector<8x32xf32>
    %c0_9 = arith.constant 0 : index
    %c0_10 = arith.constant 0 : index
    %10 = vector.load %arg6[%c0_9, %c0_10] : memref<1x32xf32, #tpu.memory_space<vmem>>, vector<1x32xf32>
    %11 = vector.broadcast %10 : vector<1x32xf32> to vector<8x32xf32>
    %12 = arith.addf %9, %11 : vector<8x32xf32>
    %c0_11 = arith.constant 0 : index
    %c0_12 = arith.constant 0 : index
    %13 = vector.load %arg7[%c0_11, %c0_12] : memref<64x32xf32, #tpu.memory_space<vmem>>, vector<64x32xf32>
    %cst_13 = arith.constant dense<0.000000e+00> : vector<8x32xf32>
    %14 = tpu.matmul %7, %13, %cst_13 {dimension_numbers = #tpu.dot_dimension_numbers<[1], [0], [0], [1], [0, 0, 1, 1], [], []>} : vector<8x64xf32>, vector<64x32xf32>, vector<8x32xf32> -> vector<8x32xf32>
    %c0_14 = arith.constant 0 : index
    %c0_15 = arith.constant 0 : index
    %15 = vector.load %arg8[%c0_14, %c0_15] : memref<1x32xf32, #tpu.memory_space<vmem>>, vector<1x32xf32>
    %16 = vector.broadcast %15 : vector<1x32xf32> to vector<8x32xf32>
    %17 = arith.addf %14, %16 : vector<8x32xf32>
    %c0_16 = arith.constant 0 : index
    %c0_17 = arith.constant 0 : index
    %18 = vector.load %arg2[%c0_16, %c0_17] : memref<8x32xf32, #tpu.memory_space<vmem>>, vector<8x32xf32>
    %19 = arith.mulf %12, %18 : vector<8x32xf32>
    %20 = arith.addf %19, %17 : vector<8x32xf32>
    %c0_18 = arith.constant 0 : index
    %c0_19 = arith.constant 0 : index
    %21 = vector.load %arg9[%c0_18, %c0_19] : memref<8x32xf32, #tpu.memory_space<vmem>>, vector<8x32xf32>
    tpu.vector_store %arg9[%c0_18, %c0_19], %20 {strides = array<i32>} : memref<8x32xf32, #tpu.memory_space<vmem>>, vector<8x32xf32>,
    return
  }
  func.func @transform_0(%arg0: i32) -> (i32, i32) {
    %c0_i32 = arith.constant 0 : i32
    %c0_i32_0 = arith.constant 0 : i32
    return %arg0, %c0_i32 : i32, i32
  }
  func.func @transform_1(%arg0: i32) -> (i32, i32) {
    %c0_i32 = arith.constant 0 : i32
    %c0_i32_0 = arith.constant 0 : i32
    return %arg0, %c0_i32 : i32, i32
  }
  func.func @transform_2(%arg0: i32) -> (i32, i32) {
    %c0_i32 = arith.constant 0 : i32
    %c0_i32_0 = arith.constant 0 : i32
    %c0_i32_1 = arith.constant 0 : i32
    return %c0_i32, %c0_i32_0 : i32, i32
  }
  func.func @transform_3(%arg0: i32) -> (i32, i32) {
    %c0_i32 = arith.constant 0 : i32
    %c0_i32_0 = arith.constant 0 : i32
    %c0_i32_1 = arith.constant 0 : i32
    return %c0_i32, %c0_i32_0 : i32, i32
  }
  func.func @transform_4(%arg0: i32) -> (i32, i32) {
    %c0_i32 = arith.constant 0 : i32
    %c0_i32_0 = arith.constant 0 : i32
    %c0_i32_1 = arith.constant 0 : i32
    return %c0_i32, %c0_i32_0 : i32, i32
  }
  func.func @transform_5(%arg0: i32) -> (i32, i32) {
    %c0_i32 = arith.constant 0 : i32
    %c0_i32_0 = arith.constant 0 : i32
    %c0_i32_1 = arith.constant 0 : i32
    return %c0_i32, %c0_i32_0 : i32, i32
  }
  func.func @transform_6(%arg0: i32) -> (i32, i32) {
    %c0_i32 = arith.constant 0 : i32
    %c0_i32_0 = arith.constant 0 : i32
    %c0_i32_1 = arith.constant 0 : i32
    return %c0_i32, %c0_i32_0 : i32, i32
  }
  func.func @transform_7(%arg0: i32) -> (i32, i32) {
    %c0_i32 = arith.constant 0 : i32
    %c0_i32_0 = arith.constant 0 : i32
    %c0_i32_1 = arith.constant 0 : i32
    return %c0_i32, %c0_i32_0 : i32, i32
  }
  func.func @transform_8(%arg0: i32) -> (i32, i32) {
    %c0_i32 = arith.constant 0 : i32
    %c0_i32_0 = arith.constant 0 : i32
    return %arg0, %c0_i32 : i32, i32
  }
}

</mosaic_0001>

<llo_original>
// kernel: film_forward.1
$region0: #{film_forward.1}
  #allocation0 [shape = 'u32[]', space=smem, size = 0x4, offset = 0x4, fixed_abs, tag = 'smem constant byte address 0x4 - core index']
  #allocation1 [shape = 'u32[144,128]{1,0:T(1,128)}', space=vmem, size = 0x12000, scoped, tag = 'internal scratch']
  %s0 = inlined_call_operand.vmem [shape: f32[16,32], index: 0, kind: input, shape index: {}]
  %s1 = inlined_call_operand.vmem [shape: f32[16,32], index: 1, kind: input, shape index: {}]
  %s2 = inlined_call_operand.vmem [shape: f32[32,64], index: 2, kind: input, shape index: {}]
  %s3 = inlined_call_operand.vmem [shape: f32[1,64], index: 3, kind: input, shape index: {}]
  %s4 = inlined_call_operand.vmem [shape: f32[64,32], index: 4, kind: input, shape index: {}]
  %s5 = inlined_call_operand.vmem [shape: f32[1,32], index: 5, kind: input, shape index: {}]
  %s6 = inlined_call_operand.vmem [shape: f32[64,32], index: 6, kind: input, shape index: {}]
  %s7 = inlined_call_operand.vmem [shape: f32[1,32], index: 7, kind: input, shape index: {}]
  %s8 = inlined_call_operand.hbm [shape: f32[16,32], index: 8, kind: output, shape index: {}]
  %s9 = sld [smem:[#allocation0]]
  $region65: #{film_forward.1} parent=0
    _
  %s11 = ssub.s32 1, %s9
  %s12 = scalar_select 0, %s11, %s9
  $region1: #{film_forward.1} parent=0
    #allocation2 [shape = 'u8[8192]{0}', space=vmem, size = 0x2000, scoped, tag = 'output window, operand 0']
    #allocation3 [shape = 's32[2]{0}', space=sflag, size = 0x8, scoped, tag = 'scoped memory for film_forward.1']
    %13 = vsyncpa [#allocation3], 0
    %s14 = scalar_lea.sflag [#allocation3], 1
    %15 = vsyncpa %s14, 0
    loop: start=0, step=1, limit=4
    $region2: #{film_forward.1} parent=1 // loop_pre_header
      _
    $region3: #{film_forward.1} parent=1 // loop_header
      %s17 = sphi 0, %s21
      %p18 = scmp.ge.s32.totalorder %s17, 4
      %s27 = sphi 0, %s29
      %s30 = sphi 0, %s27
      %s31 = sphi 0, %s30
      %s47 = sphi 0, %s31
      %s53 = sphi 0, %s55
      %s56 = sphi 0, %s53
      %s57 = sphi 0, %s56
      %s73 = sphi 0, %s57
      %s77 = sphi 0, %s77
      %s79 = sphi 0, %s77
      %s80 = sphi 0, %s79
      %s94 = sphi 0, %s80
      %s98 = sphi 0, %s98
      %s100 = sphi 0, %s98
      %s101 = sphi 0, %s100
      %s115 = sphi 0, %s101
      %s119 = sphi 0, %s119
      %s121 = sphi 0, %s119
      %s122 = sphi 0, %s121
      %s136 = sphi 0, %s122
      %s140 = sphi 0, %s140
      %s142 = sphi 0, %s140
      %s143 = sphi 0, %s142
      %s157 = sphi 0, %s143
      %s161 = sphi 0, %s161
      %s163 = sphi 0, %s161
      %s164 = sphi 0, %s163
      %s178 = sphi 0, %s164
      %s182 = sphi 0, %s182
      %s184 = sphi 0, %s182
      %s185 = sphi 0, %s184
      %s199 = sphi 0, %s185
      %s205 = sphi 0, %s207
      %s208 = sphi 0, %s205
      %s209 = sphi 0, %s208
      %s225 = sphi 0, %s209
    $region4: #{film_forward.1} parent=1 // loop_header_branch
      %20 = sbr.rel (%p18) target = $region8
    $region5: #{film_forward.1} parent=1 // loop_body
      %s22 = ssub.s32 %s17, 1
      %s23 = ssub.s32 %s17, 2
      %s24 = sadd.s32 %s17, 1
      %s25 = ssub.s32 %s17, %s24
      %p26 = scmp.eq.s32.totalorder %s25, 0
      %s28 = sadd.s32 %s27, 1
      %s29 = scalar_select %p26, %s27, %s28
      %p32 = pneg %p26
      %p33 = scmp.eq.s32.totalorder %s17, 1
      %p34 = por %p32, %p33
      %p35 = scmp.ne.s32.totalorder %s27, %s30
      %p36 = scmp.eq.s32.totalorder %s17, 0
      %p37 = por %p35, %p36
      %p38 = scmp.ne.s32.totalorder %s27, %s30
      %p39 = scmp.eq.s32.totalorder %s22, 1
      %p40 = por %p38, %p39
      %p41 = scmp.ne.s32.totalorder %s30, %s31
      %p42 = scmp.eq.s32.totalorder %s22, 0
      %p43 = por %p41, %p42
      %p44 = scmp.ne.s32.totalorder %s30, %s31
      %p45 = scmp.eq.s32.totalorder %s23, 1
      %p46 = por %p44, %p45
      %p48 = scmp.ne.s32.totalorder %s31, %s47
      %p49 = scmp.eq.s32.totalorder %s23, 0
      %p50 = por %p48, %p49
      %s51 = ssub.s32 %s17, %s24
      %p52 = scmp.eq.s32.totalorder %s51, 0
      %s54 = sadd.s32 %s53, 1
      %s55 = scalar_select %p52, %s53, %s54
      %p58 = pneg %p52
      %p59 = scmp.eq.s32.totalorder %s17, 1
      %p60 = por %p58, %p59
      %p61 = scmp.ne.s32.totalorder %s53, %s56
      %p62 = scmp.eq.s32.totalorder %s17, 0
      %p63 = por %p61, %p62
      %p64 = scmp.ne.s32.totalorder %s53, %s56
      %p65 = scmp.eq.s32.totalorder %s22, 1
      %p66 = por %p64, %p65
      %p67 = scmp.ne.s32.totalorder %s56, %s57
      %p68 = scmp.eq.s32.totalorder %s22, 0
      %p69 = por %p67, %p68
      %p70 = scmp.ne.s32.totalorder %s56, %s57
      %p71 = scmp.eq.s32.totalorder %s23, 1
      %p72 = por %p70, %p71
      %p74 = scmp.ne.s32.totalorder %s57, %s73
      %p75 = scmp.eq.s32.totalorder %s23, 0
      %p76 = por %p74, %p75
      %s78 = sadd.s32 %s77, 1
      %p81 = scmp.eq.s32.totalorder %s17, 1
      %p82 = scmp.ne.s32.totalorder %s77, %s79
      %p83 = scmp.eq.s32.totalorder %s17, 0
      %p84 = por %p82, %p83
      %p85 = scmp.ne.s32.totalorder %s77, %s79
      %p86 = scmp.eq.s32.totalorder %s22, 1
      %p87 = por %p85, %p86
      %p88 = scmp.ne.s32.totalorder %s79, %s80
      %p89 = scmp.eq.s32.totalorder %s22, 0
      %p90 = por %p88, %p89
      %p91 = scmp.ne.s32.totalorder %s79, %s80
      %p92 = scmp.eq.s32.totalorder %s23, 1
      %p93 = por %p91, %p92
      %p95 = scmp.ne.s32.totalorder %s80, %s94
      %p96 = scmp.eq.s32.totalorder %s23, 0
      %p97 = por %p95, %p96
      %s99 = sadd.s32 %s98, 1
      %p102 = scmp.eq.s32.totalorder %s17, 1
      %p103 = scmp.ne.s32.totalorder %s98, %s100
      %p104 = scmp.eq.s32.totalorder %s17, 0
      %p105 = por %p103, %p104
      %p106 = scmp.ne.s32.totalorder %s98, %s100
      %p107 = scmp.eq.s32.totalorder %s22, 1
      %p108 = por %p106, %p107
      %p109 = scmp.ne.s32.totalorder %s100, %s101
      %p110 = scmp.eq.s32.totalorder %s22, 0
      %p111 = por %p109, %p110
      %p112 = scmp.ne.s32.totalorder %s100, %s101
      %p113 = scmp.eq.s32.totalorder %s23, 1
      %p114 = por %p112, %p113
      %p116 = scmp.ne.s32.totalorder %s101, %s115
      %p117 = scmp.eq.s32.totalorder %s23, 0
      %p118 = por %p116, %p117
      %s120 = sadd.s32 %s119, 1
      %p123 = scmp.eq.s32.totalorder %s17, 1
      %p124 = scmp.ne.s32.totalorder %s119, %s121
      %p125 = scmp.eq.s32.totalorder %s17, 0
      %p126 = por %p124, %p125
      %p127 = scmp.ne.s32.totalorder %s119, %s121
      %p128 = scmp.eq.s32.totalorder %s22, 1
      %p129 = por %p127, %p128
      %p130 = scmp.ne.s32.totalorder %s121, %s122
      %p131 = scmp.eq.s32.totalorder %s22, 0
      %p132 = por %p130, %p131
      %p133 = scmp.ne.s32.totalorder %s121, %s122
      %p134 = scmp.eq.s32.totalorder %s23, 1
      %p135 = por %p133, %p134
      %p137 = scmp.ne.s32.totalorder %s122, %s136
      %p138 = scmp.eq.s32.totalorder %s23, 0
      %p139 = por %p137, %p138
      %s141 = sadd.s32 %s140, 1
      %p144 = scmp.eq.s32.totalorder %s17, 1
      %p145 = scmp.ne.s32.totalorder %s140, %s142
      %p146 = scmp.eq.s32.totalorder %s17, 0
      %p147 = por %p145, %p146
      %p148 = scmp.ne.s32.totalorder %s140, %s142
      %p149 = scmp.eq.s32.totalorder %s22, 1
      %p150 = por %p148, %p149
      %p151 = scmp.ne.s32.totalorder %s142, %s143
      %p152 = scmp.eq.s32.totalorder %s22, 0
      %p153 = por %p151, %p152
      %p154 = scmp.ne.s32.totalorder %s142, %s143
      %p155 = scmp.eq.s32.totalorder %s23, 1
      %p156 = por %p154, %p155
      %p158 = scmp.ne.s32.totalorder %s143, %s157
      %p159 = scmp.eq.s32.totalorder %s23, 0
      %p160 = por %p158, %p159
      %s162 = sadd.s32 %s161, 1
      %p165 = scmp.eq.s32.totalorder %s17, 1
      %p166 = scmp.ne.s32.totalorder %s161, %s163
      %p167 = scmp.eq.s32.totalorder %s17, 0
      %p168 = por %p166, %p167
      %p169 = scmp.ne.s32.totalorder %s161, %s163
      %p170 = scmp.eq.s32.totalorder %s22, 1
      %p171 = por %p169, %p170
      %p172 = scmp.ne.s32.totalorder %s163, %s164
      %p173 = scmp.eq.s32.totalorder %s22, 0
      %p174 = por %p172, %p173
      %p175 = scmp.ne.s32.totalorder %s163, %s164
      %p176 = scmp.eq.s32.totalorder %s23, 1
      %p177 = por %p175, %p176
      %p179 = scmp.ne.s32.totalorder %s164, %s178
      %p180 = scmp.eq.s32.totalorder %s23, 0
      %p181 = por %p179, %p180
      %s183 = sadd.s32 %s182, 1
      %p186 = scmp.eq.s32.totalorder %s17, 1
      %p187 = scmp.ne.s32.totalorder %s182, %s184
      %p188 = scmp.eq.s32.totalorder %s17, 0
      %p189 = por %p187, %p188
      %p190 = scmp.ne.s32.totalorder %s182, %s184
      %p191 = scmp.eq.s32.totalorder %s22, 1
      %p192 = por %p190, %p191
      %p193 = scmp.ne.s32.totalorder %s184, %s185
      %p194 = scmp.eq.s32.totalorder %s22, 0
      %p195 = por %p193, %p194
      %p196 = scmp.ne.s32.totalorder %s184, %s185
      %p197 = scmp.eq.s32.totalorder %s23, 1
      %p198 = por %p196, %p197
      %p200 = scmp.ne.s32.totalorder %s185, %s199
      %p201 = scmp.eq.s32.totalorder %s23, 0
      %p202 = por %p200, %p201
      %s203 = ssub.s32 %s17, %s24
      %p204 = scmp.eq.s32.totalorder %s203, 0
      %s206 = sadd.s32 %s205, 1
      %s207 = scalar_select %p204, %s205, %s206
      %p210 = pneg %p204
      %p211 = scmp.eq.s32.totalorder %s17, 1
      %p212 = por %p210, %p211
      %p213 = scmp.ne.s32.totalorder %s205, %s208
      %p214 = scmp.eq.s32.totalorder %s17, 0
      %p215 = por %p213, %p214
      %p216 = scmp.ne.s32.totalorder %s205, %s208
      %p217 = scmp.eq.s32.totalorder %s22, 1
      %p218 = por %p216, %p217
      %p219 = scmp.ne.s32.totalorder %s208, %s209
      %p220 = scmp.eq.s32.totalorder %s22, 0
      %p221 = por %p219, %p220
      %p222 = scmp.ne.s32.totalorder %s208, %s209
      %p223 = scmp.eq.s32.totalorder %s23, 1
      %p224 = por %p222, %p223
      %p226 = scmp.ne.s32.totalorder %s209, %s225
      %p227 = scmp.eq.s32.totalorder %s23, 0
      %p228 = por %p226, %p227
      %p229 = scmp.le.s32.totalorder 1, %s17
      %p230 = scmp.lt.s32.totalorder %s17, 3
      %p231 = pnand %p229, %p230
      %p232 = pneg %p231
      // Predicated region
      $region9: #{film_forward.1} parent=5 // pred_check
        _
      $region10: #{film_forward.1} parent=5 // pred_check_branch
        %234 = sbr.rel (%p231) target = $region12
      $region11: #{film_forward.1} parent=5 // pred_region
        %s235 = ssub.s32 %s17, 1
        // Predicated region
        $region13: #{film_forward.1} parent=11 // pred_check
          %p236 = pneg %p90
        $region14: #{film_forward.1} parent=11 // pred_check_branch
          %238 = sbr.rel (%p236) target = $region16
        $region15: #{film_forward.1} parent=11 // pred_region
          _
        $region16: #{film_forward.1} parent=11 // pred_fallthru
          _
        // Predicated region
        $region17: #{film_forward.1} parent=11 // pred_check
          %p239 = pneg %p111
        $region18: #{film_forward.1} parent=11 // pred_check_branch
          %241 = sbr.rel (%p239) target = $region20
        $region19: #{film_forward.1} parent=11 // pred_region
          _
        $region20: #{film_forward.1} parent=11 // pred_fallthru
          _
        // Predicated region
        $region21: #{film_forward.1} parent=11 // pred_check
          %p242 = pneg %p132
        $region22: #{film_forward.1} parent=11 // pred_check_branch
          %244 = sbr.rel (%p242) target = $region24
        $region23: #{film_forward.1} parent=11 // pred_region
          _
        $region24: #{film_forward.1} parent=11 // pred_fallthru
          _
        // Predicated region
        $region25: #{film_forward.1} parent=11 // pred_check
          %p245 = pneg %p153
        $region26: #{film_forward.1} parent=11 // pred_check_branch
          %247 = sbr.rel (%p245) target = $region28
        $region27: #{film_forward.1} parent=11 // pred_region
          _
        $region28: #{film_forward.1} parent=11 // pred_fallthru
          _
        // Predicated region
        $region29: #{film_forward.1} parent=11 // pred_check
          %p248 = pneg %p174
        $region30: #{film_forward.1} parent=11 // pred_check_branch
          %250 = sbr.rel (%p248) target = $region32
        $region31: #{film_forward.1} parent=11 // pred_region
          _
        $region32: #{film_forward.1} parent=11 // pred_fallthru
          _
        // Predicated region
        $region33: #{film_forward.1} parent=11 // pred_check
          %p251 = pneg %p195
        $region34: #{film_forward.1} parent=11 // pred_check_branch
          %253 = sbr.rel (%p251) target = $region36
        $region35: #{film_forward.1} parent=11 // pred_region
          _
        $region36: #{film_forward.1} parent=11 // pred_fallthru
          _
      $region12: #{film_forward.1} parent=5 // pred_fallthru
        _
      %p254 = scmp.lt.s32.totalorder %s17, 2
      // Predicated region
      $region37: #{film_forward.1} parent=5 // pred_check
        %p255 = pneg %p254
      $region38: #{film_forward.1} parent=5 // pred_check_branch
        %257 = sbr.rel (%p255) target = $region40
      $region39: #{film_forward.1} parent=5 // pred_region
        // Predicated region
        $region41: #{film_forward.1} parent=39 // pred_check
          %p258 = pneg %p37
        $region42: #{film_forward.1} parent=39 // pred_check_branch
          %260 = sbr.rel (%p258) target = $region44
        $region43: #{film_forward.1} parent=39 // pred_region
          %p261 = scmp.lt.s32.totalorder %s17, 1
          %s262 = scalar_select %p261, %s17, 1
          %s263 = smul.addr %s262, 8
          %s264 = scalar_lea.vmem %s0, %s263
        $region44: #{film_forward.1} parent=39 // pred_fallthru
          _
        // Predicated region
        $region45: #{film_forward.1} parent=39 // pred_check
          %p265 = pneg %p63
        $region46: #{film_forward.1} parent=39 // pred_check_branch
          %267 = sbr.rel (%p265) target = $region48
        $region47: #{film_forward.1} parent=39 // pred_region
          %p268 = scmp.lt.s32.totalorder %s17, 1
          %s269 = scalar_select %p268, %s17, 1
          %s270 = smul.addr %s269, 8
          %s271 = scalar_lea.vmem %s1, %s270
        $region48: #{film_forward.1} parent=39 // pred_fallthru
          _
      $region40: #{film_forward.1} parent=5 // pred_fallthru
        _
      %p272 = scmp.le.s32.totalorder 1, %s17
      %p273 = scmp.lt.s32.totalorder %s17, 3
      %p274 = pnand %p272, %p273
      %p275 = pneg %p274
      // Predicated region
      $region49: #{film_forward.1} parent=5 // pred_check
        _
      $region50: #{film_forward.1} parent=5 // pred_check_branch
        %277 = sbr.rel (%p274) target = $region52
      $region51: #{film_forward.1} parent=5 // pred_region
        %s278 = ssub.s32 %s17, 1
        %p279 = scmp.lt.s32.totalorder %s22, 1
        %s280 = scalar_select %p279, %s22, 1
        %s281 = smul.addr %s280, 8
        %s282 = scalar_lea.vmem %s0, %s281
        %p283 = pneg %p43
        %p284 = pneg %p40
        %p285 = scmp.lt.s32.totalorder %s22, 1
        %s286 = scalar_select %p285, %s22, 1
        %s287 = smul.addr %s286, 8
        %s288 = scalar_lea.vmem %s1, %s287
        %p289 = pneg %p69
        %p290 = pneg %p66
        %p291 = pneg %p90
        %p292 = pneg %p87
        %p293 = pneg %p111
        %p294 = pneg %p108
        %p295 = pneg %p132
        %p296 = pneg %p129
        %p297 = pneg %p153
        %p298 = pneg %p150
        %p299 = pneg %p174
        %p300 = pneg %p171
        %p301 = pneg %p195
        %p302 = pneg %p192
        %p303 = pneg %p221
        %p304 = pneg %p218
        %s305 = sand.u32 %s208, 1
        %s306 = scalar_lea.sflag [#allocation3], %s305
        %s307 = sand.u32 %s208, 1
        %s308 = smul.addr %s307, 8
        %s309 = scalar_lea.vmem [#allocation2], %s308
        %p310 = scmp.lt.s32.totalorder %s22, 1
        %s311 = scalar_select %p310, %s22, 1
        %s312 = smul.addr %s311, 8
        %s313 = scalar_lea.vmem %s0, %s312
        %p314 = scmp.lt.s32.totalorder %s22, 1
        %s315 = scalar_select %p314, %s22, 1
        %s316 = smul.addr %s315, 8
        %s317 = scalar_lea.vmem %s1, %s316
        %v318 = vld [vmem:[%s313] sm:$0xff]
        %v319 = vld [vmem:[%s2] sm:$0xff]
        %v320 = vld [vmem:[%s2 + $0x8] sm:$0xff]
        %v321 = vld [vmem:[%s2 + $0x10] sm:$0xff]
        %v322 = vld [vmem:[%s2 + $0x18] sm:$0xff]
        %v323 = vld [vmem:[%s3] sm:$0x1]
        %v325 = vlaneseq
        %v326 = vshrl.u32 %v325, 7
        %v327 = vsub.s32 0, %v326
        %v328 = vrot.slane %v323, %v327
        %vm330 = vcmask 261120
        %v332 = vsel %vm330, %v318, 0
        %334 = vmatprep.subr.mxu0 0.0
        %335 = vmatpush1.msra.mxu0 %v319
        %336 = vmatprep.subr.mxu0 0.0
        %337 = vmatpush1.msra.mxu0 %v320
        %338 = vmatprep.subr.mxu0 0.0
        %339 = vmatpush1.msra.mxu0 %v321
        %340 = vmatprep.subr.mxu0 0.0
        %341 = vmatpush1.msra.mxu0 %v322
        %342 = vmatprep.subr.mxu0 0.0
        %343 = vmatpush1.msra.mxu0 0.0
        %344 = vmatprep.subr.mxu0 0.0
        %345 = vmatpush1.msra.mxu0 0.0
        %346 = vmatprep.subr.mxu0 0.0
        %347 = vmatpush1.msra.mxu0 0.0
        %348 = vmatprep.subr.mxu0 0.0
        %349 = vmatpush1.msra.mxu0 0.0
        %350 = vmatprep.subr.mxu0 0.0
        %351 = vmatpush1.msra.mxu0 0.0
        %352 = vmatprep.subr.mxu0 0.0
        %353 = vmatpush1.msra.mxu0 0.0
        %354 = vmatprep.subr.mxu0 0.0
        %355 = vmatpush1.msra.mxu0 0.0
        %356 = vmatprep.subr.mxu0 0.0
        %357 = vmatpush1.msra.mxu0 0.0
        %358 = vmatprep.subr.mxu0 0.0
        %359 = vmatpush1.msra.mxu0 0.0
        %360 = vmatprep.subr.mxu0 0.0
        %361 = vmatpush1.msra.mxu0 0.0
        %362 = vmatprep.subr.mxu0 0.0
        %363 = vmatpush1.msra.mxu0 0.0
        %364 = vmatprep.subr.mxu0 0.0
        %365 = vmatpush1.msra.mxu0 0.0
        %366 = vmatprep.subr.mxu0 0.0
        %367 = vmatpush1.msra.mxu0 0.0
        %368 = vmatprep.subr.mxu0 0.0
        %369 = vmatpush1.msra.mxu0 0.0
        %370 = vmatprep.subr.mxu0 0.0
        %371 = vmatpush1.msra.mxu0 0.0
        %372 = vmatprep.subr.mxu0 0.0
        %373 = vmatpush1.msra.mxu0 0.0
        %374 = vmatprep.subr.mxu0 0.0
        %375 = vmatpush1.msra.mxu0 0.0
        %376 = vmatprep.subr.mxu0 0.0
        %377 = vmatpush1.msra.mxu0 0.0
        %378 = vmatprep.subr.mxu0 0.0
        %379 = vmatpush1.msra.mxu0 0.0
        %380 = vmatprep.subr.mxu0 0.0
        %381 = vmatpush1.msra.mxu0 0.0
        %382 = vmatprep.subr.mxu0 0.0
        %383 = vmatpush1.msra.mxu0 0.0
        %384 = vmatprep.subr.mxu0 0.0
        %385 = vmatpush1.msra.mxu0 0.0
        %386 = vmatprep.subr.mxu0 0.0
        %387 = vmatpush1.msra.mxu0 0.0
        %388 = vmatprep.subr.mxu0 0.0
        %389 = vmatpush1.msra.mxu0 0.0
        %390 = vmatprep.subr.mxu0 0.0
        %391 = vmatpush1.msra.mxu0 0.0
        %392 = vmatprep.subr.mxu0 0.0
        %393 = vmatpush1.msra.mxu0 0.0
        %394 = vmatprep.subr.mxu0 0.0
        %395 = vmatpush1.msra.mxu0 0.0
        %396 = vmatprep.subr.mxu0 0.0
        %397 = vmatpush1.msra.mxu0 0.0
        %398 = vmatprep.mubr.f32.mxu0 0.0
        %399 = vmatmul.mubr.f32.gmra.mrb[0].mxu0 %v332
        %v400 = vpop.f32.mrb[0].mxu0
        %v401 = vadd.f32 %v328, %v400
        %v402 = vpop.f32.mrb[0].mxu0
        %403 = vdwg.mxu0
        %v404 = vmax.f32 %v401, 0.0
        %v405 = vld [vmem:[%s4] sm:$0xff]
        %v406 = vld [vmem:[%s4 + $0x8] sm:$0xff]
        %v407 = vld [vmem:[%s4 + $0x10] sm:$0xff]
        %v408 = vld [vmem:[%s4 + $0x18] sm:$0xff]
        %v409 = vld [vmem:[%s4 + $0x20] sm:$0xff]
        %v410 = vld [vmem:[%s4 + $0x28] sm:$0xff]
        %v411 = vld [vmem:[%s4 + $0x30] sm:$0xff]
        %v412 = vld [vmem:[%s4 + $0x38] sm:$0xff]
        %v413 = vld [vmem:[%s5] sm:$0x1]
        %v415 = vlaneseq
        %v416 = vshrl.u32 %v415, 7
        %v417 = vsub.s32 0, %v416
        %v418 = vrot.slane %v413, %v417
        %vm420 = vcmask 523264
        %v422 = vsel %vm420, %v404, 0
        %424 = vmatprep.subr.mxu0 0.0
        %425 = vmatpush1.msra.mxu0 %v405
        %426 = vmatprep.subr.mxu0 0.0
        %427 = vmatpush1.msra.mxu0 %v406
        %428 = vmatprep.subr.mxu0 0.0
        %429 = vmatpush1.msra.mxu0 %v407
        %430 = vmatprep.subr.mxu0 0.0
        %431 = vmatpush1.msra.mxu0 %v408
        %432 = vmatprep.subr.mxu0 0.0
        %433 = vmatpush1.msra.mxu0 %v409
        %434 = vmatprep.subr.mxu0 0.0
        %435 = vmatpush1.msra.mxu0 %v410
        %436 = vmatprep.subr.mxu0 0.0
        %437 = vmatpush1.msra.mxu0 %v411
        %438 = vmatprep.subr.mxu0 0.0
        %439 = vmatpush1.msra.mxu0 %v412
        %440 = vmatprep.subr.mxu0 0.0
        %441 = vmatpush1.msra.mxu0 0.0
        %442 = vmatprep.subr.mxu0 0.0
        %443 = vmatpush1.msra.mxu0 0.0
        %444 = vmatprep.subr.mxu0 0.0
        %445 = vmatpush1.msra.mxu0 0.0
        %446 = vmatprep.subr.mxu0 0.0
        %447 = vmatpush1.msra.mxu0 0.0
        %448 = vmatprep.subr.mxu0 0.0
        %449 = vmatpush1.msra.mxu0 0.0
        %450 = vmatprep.subr.mxu0 0.0
        %451 = vmatpush1.msra.mxu0 0.0
        %452 = vmatprep.subr.mxu0 0.0
        %453 = vmatpush1.msra.mxu0 0.0
        %454 = vmatprep.subr.mxu0 0.0
        %455 = vmatpush1.msra.mxu0 0.0
        %456 = vmatprep.subr.mxu0 0.0
        %457 = vmatpush1.msra.mxu0 0.0
        %458 = vmatprep.subr.mxu0 0.0
        %459 = vmatpush1.msra.mxu0 0.0
        %460 = vmatprep.subr.mxu0 0.0
        %461 = vmatpush1.msra.mxu0 0.0
        %462 = vmatprep.subr.mxu0 0.0
        %463 = vmatpush1.msra.mxu0 0.0
        %464 = vmatprep.subr.mxu0 0.0
        %465 = vmatpush1.msra.mxu0 0.0
        %466 = vmatprep.subr.mxu0 0.0
        %467 = vmatpush1.msra.mxu0 0.0
        %468 = vmatprep.subr.mxu0 0.0
        %469 = vmatpush1.msra.mxu0 0.0
        %470 = vmatprep.subr.mxu0 0.0
        %471 = vmatpush1.msra.mxu0 0.0
        %472 = vmatprep.subr.mxu0 0.0
        %473 = vmatpush1.msra.mxu0 0.0
        %474 = vmatprep.subr.mxu0 0.0
        %475 = vmatpush1.msra.mxu0 0.0
        %476 = vmatprep.subr.mxu0 0.0
        %477 = vmatpush1.msra.mxu0 0.0
        %478 = vmatprep.subr.mxu0 0.0
        %479 = vmatpush1.msra.mxu0 0.0
        %480 = vmatprep.subr.mxu0 0.0
        %481 = vmatpush1.msra.mxu0 0.0
        %482 = vmatprep.subr.mxu0 0.0
        %483 = vmatpush1.msra.mxu0 0.0
        %484 = vmatprep.subr.mxu0 0.0
        %485 = vmatpush1.msra.mxu0 0.0
        %486 = vmatprep.subr.mxu0 0.0
        %487 = vmatpush1.msra.mxu0 0.0
        %488 = vmatprep.mubr.f32.mxu0 0.0
        %489 = vmatmul.mubr.f32.gmra.mrb[0].mxu0 %v422
        %v490 = vpop.f32.mrb[0].mxu0
        %v491 = vadd.f32 %v418, %v490
        %v492 = vpop.f32.mrb[0].mxu0
        %493 = vdwg.mxu0
        %v494 = vld [vmem:[%s6] sm:$0xff]
        %v495 = vld [vmem:[%s6 + $0x8] sm:$0xff]
        %v496 = vld [vmem:[%s6 + $0x10] sm:$0xff]
        %v497 = vld [vmem:[%s6 + $0x18] sm:$0xff]
        %v498 = vld [vmem:[%s6 + $0x20] sm:$0xff]
        %v499 = vld [vmem:[%s6 + $0x28] sm:$0xff]
        %v500 = vld [vmem:[%s6 + $0x30] sm:$0xff]
        %v501 = vld [vmem:[%s6 + $0x38] sm:$0xff]
        %v502 = vld [vmem:[%s7] sm:$0x1]
        %v504 = vlaneseq
        %v505 = vshrl.u32 %v504, 7
        %v506 = vsub.s32 0, %v505
        %v507 = vrot.slane %v502, %v506
        %509 = vmatprep.subr.mxu0 0.0
        %510 = vmatpush1.msra.mxu0 %v494
        %511 = vmatprep.subr.mxu0 0.0
        %512 = vmatpush1.msra.mxu0 %v495
        %513 = vmatprep.subr.mxu0 0.0
        %514 = vmatpush1.msra.mxu0 %v496
        %515 = vmatprep.subr.mxu0 0.0
        %516 = vmatpush1.msra.mxu0 %v497
        %517 = vmatprep.subr.mxu0 0.0
        %518 = vmatpush1.msra.mxu0 %v498
        %519 = vmatprep.subr.mxu0 0.0
        %520 = vmatpush1.msra.mxu0 %v499
        %521 = vmatprep.subr.mxu0 0.0
        %522 = vmatpush1.msra.mxu0 %v500
        %523 = vmatprep.subr.mxu0 0.0
        %524 = vmatpush1.msra.mxu0 %v501
        %525 = vmatprep.subr.mxu0 0.0
        %526 = vmatpush1.msra.mxu0 0.0
        %527 = vmatprep.subr.mxu0 0.0
        %528 = vmatpush1.msra.mxu0 0.0
        %529 = vmatprep.subr.mxu0 0.0
        %530 = vmatpush1.msra.mxu0 0.0
        %531 = vmatprep.subr.mxu0 0.0
        %532 = vmatpush1.msra.mxu0 0.0
        %533 = vmatprep.subr.mxu0 0.0
        %534 = vmatpush1.msra.mxu0 0.0
        %535 = vmatprep.subr.mxu0 0.0
        %536 = vmatpush1.msra.mxu0 0.0
        %537 = vmatprep.subr.mxu0 0.0
        %538 = vmatpush1.msra.mxu0 0.0
        %539 = vmatprep.subr.mxu0 0.0
        %540 = vmatpush1.msra.mxu0 0.0
        %541 = vmatprep.subr.mxu0 0.0
        %542 = vmatpush1.msra.mxu0 0.0
        %543 = vmatprep.subr.mxu0 0.0
        %544 = vmatpush1.msra.mxu0 0.0
        %545 = vmatprep.subr.mxu0 0.0
        %546 = vmatpush1.msra.mxu0 0.0
        %547 = vmatprep.subr.mxu0 0.0
        %548 = vmatpush1.msra.mxu0 0.0
        %549 = vmatprep.subr.mxu0 0.0
        %550 = vmatpush1.msra.mxu0 0.0
        %551 = vmatprep.subr.mxu0 0.0
        %552 = vmatpush1.msra.mxu0 0.0
        %553 = vmatprep.subr.mxu0 0.0
        %554 = vmatpush1.msra.mxu0 0.0
        %555 = vmatprep.subr.mxu0 0.0
        %556 = vmatpush1.msra.mxu0 0.0
        %557 = vmatprep.subr.mxu0 0.0
        %558 = vmatpush1.msra.mxu0 0.0
        %559 = vmatprep.subr.mxu0 0.0
        %560 = vmatpush1.msra.mxu0 0.0
        %561 = vmatprep.subr.mxu0 0.0
        %562 = vmatpush1.msra.mxu0 0.0
        %563 = vmatprep.subr.mxu0 0.0
        %564 = vmatpush1.msra.mxu0 0.0
        %565 = vmatprep.subr.mxu0 0.0
        %566 = vmatpush1.msra.mxu0 0.0
        %567 = vmatprep.subr.mxu0 0.0
        %568 = vmatpush1.msra.mxu0 0.0
        %569 = vmatprep.subr.mxu0 0.0
        %570 = vmatpush1.msra.mxu0 0.0
        %571 = vmatprep.subr.mxu0 0.0
        %572 = vmatpush1.msra.mxu0 0.0
        %573 = vmatprep.mubr.f32.mxu0 0.0
        %574 = vmatmul.mubr.f32.gmra.mrb[0].mxu0 %v422
        %v575 = vpop.f32.mrb[0].mxu0
        %v576 = vadd.f32 %v507, %v575
        %v577 = vpop.f32.mrb[0].mxu0
        %578 = vdwg.mxu0
        %v579 = vld [vmem:[%s317] sm:$0xff]
        %v580 = vmul.f32 %v491, %v579
        %v581 = vadd.f32 %v580, %v576
        %582 = vst.msk [vmem:[%s309] sm:$0xff] %vm330, %v581
        %s583 = sand.u32 %s208, 1
        %s584 = scalar_lea.sflag [#allocation3], %s583
        %s585 = sand.u32 %s208, 1
        %s586 = smul.addr %s585, 8
        %s587 = scalar_lea.vmem [#allocation2], %s586
        // Predicated region
        $region53: #{film_forward.1} parent=51 // pred_check
          %p588 = pneg %p218
        $region54: #{film_forward.1} parent=51 // pred_check_branch
          %590 = sbr.rel (%p588) target = $region56
        $region55: #{film_forward.1} parent=51 // pred_region
          %s592 = ssub.s32 128, 128
          %593 = vsyncadd %s584, %s592
          %s594 = smul.addr %s22, 128
          %s595 = scalar_lea.hbm %s8, %s594
          %s597 = sshll.u32 %s587, 4
          %s598 = int_to_ptr.vmem [resolvable:$true] %s597
          %600 = dma.vmem_to_hbm [thread:$0]  %s598, 128, %s595, %s584
        $region56: #{film_forward.1} parent=51 // pred_fallthru
          _
      $region52: #{film_forward.1} parent=5 // pred_fallthru
        _
      %p601 = scmp.le.s32.totalorder 2, %s17
      // Predicated region
      $region57: #{film_forward.1} parent=5 // pred_check
        %p602 = pneg %p601
      $region58: #{film_forward.1} parent=5 // pred_check_branch
        %604 = sbr.rel (%p602) target = $region60
      $region59: #{film_forward.1} parent=5 // pred_region
        %s605 = ssub.s32 %s17, 2
        // Predicated region
        $region61: #{film_forward.1} parent=59 // pred_check
          %p606 = pneg %p224
        $region62: #{film_forward.1} parent=59 // pred_check_branch
          %608 = sbr.rel (%p606) target = $region64
        $region63: #{film_forward.1} parent=59 // pred_region
          %s609 = sand.u32 %s209, 1
          %s610 = scalar_lea.sflag [#allocation3], %s609
          %s611 = sand.u32 %s209, 1
          %s612 = smul.addr %s611, 8
          %s613 = scalar_lea.vmem [#allocation2], %s612
          %614 = dma.done %s610, 128
        $region64: #{film_forward.1} parent=59 // pred_fallthru
          _
      $region60: #{film_forward.1} parent=5 // pred_fallthru
        _
    $region6: #{film_forward.1} parent=1 // loop_footer
      %s21 = sadd.s32 1, %s17
    $region7: #{film_forward.1} parent=1 // loop_footer_branch
      %16 = sbr.rel target = $region3
    $region8: #{film_forward.1} parent=1 // loop_exit
      _
    %615 = vsyncpa [#allocation3], 1
    %s616 = scalar_lea.sflag [#allocation3], 1
    %617 = vsyncpa %s616, 1

</llo_original>
